<compile_context>
chip_gen: v6e
topology: v6e:2x2x1
jax: 0.10.0
libtpu: 0.0.40
codegen_flags: <defaults>
</compile_context>

<pallas_src>
import functools
import math

import jax
import jax.numpy as jnp
from jax.experimental import pallas as pl
from jax.experimental.pallas import tpu as pltpu


def _feed_attention_kernel(w_ref, x_ref, *rest, has_mask):
    if has_mask:
        mask_ref, o_ref, m_ref, l_ref, acc_ref = rest
    else:
        o_ref, m_ref, l_ref, acc_ref = rest
        mask_ref = None

    t = pl.program_id(1)

    @pl.when(t == 0)
    def _init():
        m_ref[...] = jnp.full(m_ref.shape, -jnp.inf, jnp.float32)
        l_ref[...] = jnp.zeros(l_ref.shape, jnp.float32)
        acc_ref[...] = jnp.zeros(acc_ref.shape, jnp.float32)

    x = x_ref[...]                                   # (Bb, Tt, E), native dtype
    bb = x_ref.shape[0]
    e = x_ref.shape[2]
    # Shared weight row, broadcast to the batch block (tiny: Bb*E elements).
    w = jnp.broadcast_to(w_ref[...], (bb, 1, e))     # (Bb, 1, E), native dtype

    # scores on the MXU, f32 accumulation: (Bb,1,E) x (Bb,Tt,E) -> (Bb,1,Tt)
    s = jnp.einsum("bse,bte->bst", w, x,
                   preferred_element_type=jnp.float32)
    s = jnp.tanh(s)
    if has_mask:
        # Mask applied AFTER tanh, exactly as in the PyTorch module.
        s = jnp.where(mask_ref[...] == 0, jnp.float32(-1e9), s)

    # Exact online softmax over the (chunked) time axis.
    m_prev = m_ref[...]
    m_new = jnp.maximum(m_prev, jnp.max(s, axis=-1, keepdims=True))
    alpha = jnp.exp(m_prev - m_new)
    p = jnp.exp(s - m_new)                           # (Bb, 1, Tt), f32
    l_ref[...] = alpha * l_ref[...] + jnp.sum(p, axis=-1, keepdims=True)
    # Weighted pooling on the MXU: (Bb,1,Tt) x (Bb,Tt,E) -> (Bb,1,E), f32 acc.
    acc_ref[...] = alpha * acc_ref[...] + jnp.einsum(
        "bst,bte->bse", p.astype(x.dtype), x,
        preferred_element_type=jnp.float32)
    m_ref[...] = m_new

    @pl.when(t == pl.num_programs(1) - 1)
    def _finalize():
        # Exact normalization (approximate EUP reciprocal deliberately avoided
        # for strict parity with torch.softmax; negligible cost here).
        o_ref[...] = (acc_ref[...] / l_ref[...]).astype(o_ref.dtype)


def _vmem_capacity_bytes():
    try:
        return int(pltpu.get_tpu_info().vmem_capacity_bytes)
    except Exception:
        return 64 << 20                 # conservative (v7x-sized) fallback


def _pick_time_block(T, E, itemsize, budget_bytes, step):
    """Largest time chunk Tt (divisor of T, multiple of `step`, or == T) whose
    (1, Tt, E) slab fits the per-buffer budget."""
    if T * E * itemsize <= budget_bytes:
        return T
    best = None
    for tt in range(step, T, step):
        if T % tt == 0 and tt * E * itemsize <= budget_bytes:
            best = tt
    # Fallback: stream the whole T in one chunk (only when T has no suitable
    # divisor); Bb then falls back to 1 below.
    return best if best is not None else T


def _pick_batch_block(B, Tt, E, itemsize, budget_bytes):
    """Largest batch block Bb (divisor of B) whose (Bb, Tt, E) slab fits the
    budget, preferring >= 2 batch blocks so v7x megacore gets both cores."""
    row_bytes = max(Tt * E * itemsize, 1)
    max_rows = max(1, budget_bytes // row_bytes)
    divisors = [d for d in range(1, B + 1) if B % d == 0]
    fitting = [d for d in divisors if d <= max_rows] or [1]
    multi = [d for d in fitting if B // d >= 2]
    return max(multi) if multi else max(fitting)


def feed_attention(inp, weight, mask=None):
    """inp: [B, T, E], weight: [E, 1], optional mask: [B, T, 1] (0 = masked).
    Returns [B, E] in inp.dtype."""
    B, T, E = inp.shape
    dtype = inp.dtype
    itemsize = jnp.dtype(dtype).itemsize
    has_mask = mask is not None

    # Weight cast/shaped once in the wrapper to the dtype fed to the MXU.
    w3 = weight.reshape(1, 1, E).astype(dtype)

    # Generation-aware tiling / VMEM budgets.
    vmem_cap = _vmem_capacity_bytes()
    if vmem_cap >= (100 << 20):          # v5e / v6e: 128 MiB physical VMEM
        tile_budget = 12 << 20
        limit_cap = 96 << 20
    else:                                # v7x: 64 MiB physical VMEM
        tile_budget = 4 << 20
        limit_cap = 48 << 20

    # With a mask the (Bb,1,Tt) mask block has Tt in the lane dim, so chunked
    # Tt must be a multiple of 128 (or equal to T); otherwise 8 suffices.
    Tt = _pick_time_block(T, E, itemsize, tile_budget, 128 if has_mask else 8)
    Bb = _pick_batch_block(B, Tt, E, itemsize, tile_budget)
    grid = (B // Bb, T // Tt)

    in_tile = Bb * Tt * E * itemsize
    mask_tile = Bb * Tt * 4 if has_mask else 0
    out_tile = Bb * E * itemsize
    scratch_bytes = Bb * (2 + E) * 4
    needed = 2 * (in_tile + mask_tile + out_tile) + E * itemsize + scratch_bytes
    vmem_limit = int(min(limit_cap, max(32 << 20, 2 * needed + (4 << 20))))

    in_specs = [
        pl.BlockSpec((1, 1, E), lambda b, t: (0, 0, 0)),     # weight (resident)
        pl.BlockSpec((Bb, Tt, E), lambda b, t: (b, t, 0)),   # input slab
    ]
    args = [w3, inp]
    if has_mask:
        in_specs.append(pl.BlockSpec((Bb, 1, Tt), lambda b, t: (b, 0, t)))
        args.append(mask.reshape(B, 1, T).astype(jnp.int32))

    out3 = pl.pallas_call(
        functools.partial(_feed_attention_kernel, has_mask=has_mask),
        out_shape=jax.ShapeDtypeStruct((B, 1, E), dtype),
        grid_spec=pltpu.PrefetchScalarGridSpec(
            num_scalar_prefetch=0,
            grid=grid,
            in_specs=in_specs,
            out_specs=pl.BlockSpec((Bb, 1, E), lambda b, t: (b, 0, 0)),
            scratch_shapes=[
                pltpu.VMEM((Bb, 1, 1), jnp.float32),   # running max m
                pltpu.VMEM((Bb, 1, 1), jnp.float32),   # running denom l
                pltpu.VMEM((Bb, 1, E), jnp.float32),   # running weighted sum
            ],
        ),
        compiler_params=pltpu.CompilerParams(
            dimension_semantics=("parallel", "arbitrary"),
            vmem_limit_bytes=vmem_limit),
    )(*args)
    return out3.reshape(B, E)


def _reference(inp, weight, mask=None):
    """Pure f32 element-wise reference (no matmuls, so no MXU rounding)."""
    B, T, E = inp.shape
    scores = jnp.tanh(jnp.sum(inp * weight.reshape(1, 1, E), axis=-1))   # (B,T)
    if mask is not None:
        scores = jnp.where(mask.reshape(B, T) == 0, -1e9, scores)
    a = jax.nn.softmax(scores, axis=-1)
    return jnp.sum(inp * a[..., None], axis=1)


if __name__ == "__main__":
    # Shapes consistent with input_shape = (batch, max_len, emb_size).
    B, T, E = 2, 8, 32

    key = jax.random.PRNGKey(0)
    k_inp, k_w, k_b = jax.random.split(key, 3)

    # Parameter init mimicking the PyTorch module:
    # kaiming_uniform_(weight, a=sqrt(5)) on (E,1) -> fan_in=1, bound=1.0
    w_bound = math.sqrt(6.0 / ((1.0 + 5.0) * 1.0))
    weight = jax.random.uniform(k_w, (E, 1), jnp.float32,
                                minval=-w_bound, maxval=w_bound)
    # bias: uniform(-1/sqrt(fan_in), 1/sqrt(fan_in)) — unused in forward().
    bias = jax.random.uniform(k_b, (T, 1), jnp.float32, minval=-1.0, maxval=1.0)

    inp = jax.random.normal(k_inp, (B, T, E), jnp.float32)

    # Snap demo values to bf16-representable f32 so the MXU's bf16-pass f32
    # matmul introduces no input-rounding difference vs the pure-f32 reference
    # and the parity check stays tight for any MXU pass count.
    snap = lambda a: a.astype(jnp.bfloat16).astype(jnp.float32)
    inp, weight = snap(inp), snap(weight)

    # --- default (mask=None) path ---
    out = feed_attention(inp, weight)
    jax.block_until_ready(out)
    ref = _reference(inp, weight)
    assert out.shape == (B, E)
    err = float(jnp.max(jnp.abs(out - ref)))
    # Tolerance leaves margin for MXU rounding of the f32 attention-weight
    # matmul under default Mosaic precision; typical agreement is ~1e-6.
    assert err < 5e-3, f"no-mask max abs err {err}"

    # --- masked path (mask: [B, T, 1], 0 = padded position) ---
    lengths = jnp.array([T, T - 3])
    mask = (jnp.arange(T)[None, :] < lengths[:, None]).astype(jnp.float32)[..., None]
    out_m = feed_attention(inp, weight, mask)
    jax.block_until_ready(out_m)
    ref_m = _reference(inp, weight, mask)
    err_m = float(jnp.max(jnp.abs(out_m - ref_m)))
    assert err_m < 5e-3, f"masked max abs err {err_m}"

    print("KERNEL_OK")
</pallas_src>

<mosaic_0001>
module attributes {stable_mosaic.version = 11 : i64} {
  func.func @_feed_attention_kernel(%arg0: i32, %arg1: i32, %arg2: memref<1x1x32xf32, #tpu.memory_space<vmem>>, %arg3: memref<1x8x32xf32, #tpu.memory_space<vmem>>, %arg4: memref<1x1x32xf32, #tpu.memory_space<vmem>>, %arg5: memref<1x1x1xf32, #tpu.memory_space<vmem>>, %arg6: memref<1x1x1xf32, #tpu.memory_space<vmem>>, %arg7: memref<1x1x32xf32, #tpu.memory_space<vmem>>) attributes {dimension_semantics = [#tpu.dimension_semantics<parallel>, #tpu.dimension_semantics<arbitrary>], iteration_bounds = array<i64: 2, 1>, scalar_prefetch = 0 : i64, scratch_operands = 3 : i64, tpu.core_type = #tpu.core_type<tc>, window_params = [{pipeline_mode = #tpu.pipeline_mode<synchronous>, transform_indices = @transform_0, window_bounds = array<i64: 1, 1, 32>}, {transform_indices = @transform_1, window_bounds = array<i64: 1, 8, 32>}, {transform_indices = @transform_2, window_bounds = array<i64: 1, 1, 32>}]} {
    %c0_i32 = arith.constant 0 : i32
    %0 = arith.cmpi eq, %arg1, %c0_i32 : i32
    %1 = arith.extui %0 : i1 to i32
    %c0_i32_0 = arith.constant 0 : i32
    %2 = arith.cmpi ne, %1, %c0_i32_0 : i32
    scf.if %2 {
      %cst_29 = arith.constant 0xFF800000 : f32
      %32 = vector.broadcast %cst_29 : f32 to vector<1x1x1xf32>
      %c0_30 = arith.constant 0 : index
      %c0_31 = arith.constant 0 : index
      %c0_32 = arith.constant 0 : index
      %33 = vector.load %arg5[%c0_30, %c0_31, %c0_32] : memref<1x1x1xf32, #tpu.memory_space<vmem>>, vector<1x1x1xf32>
      tpu.vector_store %arg5[%c0_30, %c0_31, %c0_32], %32 {strides = array<i32>} : memref<1x1x1xf32, #tpu.memory_space<vmem>>, vector<1x1x1xf32>,
      %cst_33 = arith.constant 0.000000e+00 : f32
      %34 = vector.broadcast %cst_33 : f32 to vector<1x1x1xf32>
      %c0_34 = arith.constant 0 : index
      %c0_35 = arith.constant 0 : index
      %c0_36 = arith.constant 0 : index
      %35 = vector.load %arg6[%c0_34, %c0_35, %c0_36] : memref<1x1x1xf32, #tpu.memory_space<vmem>>, vector<1x1x1xf32>
      tpu.vector_store %arg6[%c0_34, %c0_35, %c0_36], %34 {strides = array<i32>} : memref<1x1x1xf32, #tpu.memory_space<vmem>>, vector<1x1x1xf32>,
      %cst_37 = arith.constant 0.000000e+00 : f32
      %36 = vector.broadcast %cst_37 : f32 to vector<1x1x32xf32>
      %c0_38 = arith.constant 0 : index
      %c0_39 = arith.constant 0 : index
      %c0_40 = arith.constant 0 : index
      %37 = vector.load %arg7[%c0_38, %c0_39, %c0_40] : memref<1x1x32xf32, #tpu.memory_space<vmem>>, vector<1x1x32xf32>
      tpu.vector_store %arg7[%c0_38, %c0_39, %c0_40], %36 {strides = array<i32>} : memref<1x1x32xf32, #tpu.memory_space<vmem>>, vector<1x1x32xf32>,
    } else {
    }
    %c0 = arith.constant 0 : index
    %c0_1 = arith.constant 0 : index
    %c0_2 = arith.constant 0 : index
    %3 = vector.load %arg3[%c0, %c0_1, %c0_2] : memref<1x8x32xf32, #tpu.memory_space<vmem>>, vector<1x8x32xf32>
    %c0_3 = arith.constant 0 : index
    %c0_4 = arith.constant 0 : index
    %c0_5 = arith.constant 0 : index
    %4 = vector.load %arg2[%c0_3, %c0_4, %c0_5] : memref<1x1x32xf32, #tpu.memory_space<vmem>>, vector<1x1x32xf32>
    "tpu.trace_start"() <{level = 10 : i32, message = "bse,bte->bst"}> : () -> ()
    %cst = arith.constant dense<0.000000e+00> : vector<1x1x8xf32>
    %5 = tpu.matmul %4, %3, %cst {dimension_numbers = #tpu.dot_dimension_numbers<[2], [2], [1], [1], [0, 0, 0, 1, 1, 1], [0], [0]>} : vector<1x1x32xf32>, vector<1x8x32xf32>, vector<1x1x8xf32> -> vector<1x1x8xf32>
    "tpu.trace_stop"() : () -> ()
    %6 = math.tanh %5 : vector<1x1x8xf32>
    %c0_6 = arith.constant 0 : index
    %c0_7 = arith.constant 0 : index
    %c0_8 = arith.constant 0 : index
    %7 = vector.load %arg5[%c0_6, %c0_7, %c0_8] : memref<1x1x1xf32, #tpu.memory_space<vmem>>, vector<1x1x1xf32>
    %cst_9 = arith.constant dense<0xFF800000> : vector<1x1xf32>
    %8 = vector.multi_reduction <maximumf>, %6, %cst_9 [2] : vector<1x1x8xf32> to vector<1x1xf32>
    %9 = vector.shape_cast %8 : vector<1x1xf32> to vector<1x1x1xf32>
    %10 = arith.maximumf %7, %9 : vector<1x1x1xf32>
    %11 = arith.subf %7, %10 : vector<1x1x1xf32>
    %12 = math.exp %11 : vector<1x1x1xf32>
    %13 = vector.broadcast %10 : vector<1x1x1xf32> to vector<1x1x8xf32>
    %14 = arith.subf %6, %13 : vector<1x1x8xf32>
    %15 = math.exp %14 : vector<1x1x8xf32>
    %c0_10 = arith.constant 0 : index
    %c0_11 = arith.constant 0 : index
    %c0_12 = arith.constant 0 : index
    %16 = vector.load %arg6[%c0_10, %c0_11, %c0_12] : memref<1x1x1xf32, #tpu.memory_space<vmem>>, vector<1x1x1xf32>
    %17 = arith.mulf %12, %16 : vector<1x1x1xf32>
    %cst_13 = arith.constant dense<0.000000e+00> : vector<1x1xf32>
    %18 = vector.multi_reduction <add>, %15, %cst_13 [2] : vector<1x1x8xf32> to vector<1x1xf32>
    %19 = vector.shape_cast %18 : vector<1x1xf32> to vector<1x1x1xf32>
    %20 = arith.addf %17, %19 : vector<1x1x1xf32>
    %c0_14 = arith.constant 0 : index
    %c0_15 = arith.constant 0 : index
    %c0_16 = arith.constant 0 : index
    %21 = vector.load %arg6[%c0_14, %c0_15, %c0_16] : memref<1x1x1xf32, #tpu.memory_space<vmem>>, vector<1x1x1xf32>
    tpu.vector_store %arg6[%c0_14, %c0_15, %c0_16], %20 {strides = array<i32>} : memref<1x1x1xf32, #tpu.memory_space<vmem>>, vector<1x1x1xf32>,
    %c0_17 = arith.constant 0 : index
    %c0_18 = arith.constant 0 : index
    %c0_19 = arith.constant 0 : index
    %22 = vector.load %arg7[%c0_17, %c0_18, %c0_19] : memref<1x1x32xf32, #tpu.memory_space<vmem>>, vector<1x1x32xf32>
    %23 = vector.broadcast %12 : vector<1x1x1xf32> to vector<1x1x32xf32>
    %24 = arith.mulf %23, %22 : vector<1x1x32xf32>
    "tpu.trace_start"() <{level = 10 : i32, message = "bst,bte->bse"}> : () -> ()
    %cst_20 = arith.constant dense<0.000000e+00> : vector<1x1x32xf32>
    %25 = tpu.matmul %15, %3, %cst_20 {dimension_numbers = #tpu.dot_dimension_numbers<[2], [1], [1], [2], [0, 0, 0, 1, 1, 2], [0], [0]>} : vector<1x1x8xf32>, vector<1x8x32xf32>, vector<1x1x32xf32> -> vector<1x1x32xf32>
    "tpu.trace_stop"() : () -> ()
    %26 = arith.addf %24, %25 : vector<1x1x32xf32>
    %c0_21 = arith.constant 0 : index
    %c0_22 = arith.constant 0 : index
    %c0_23 = arith.constant 0 : index
    %27 = vector.load %arg7[%c0_21, %c0_22, %c0_23] : memref<1x1x32xf32, #tpu.memory_space<vmem>>, vector<1x1x32xf32>
    tpu.vector_store %arg7[%c0_21, %c0_22, %c0_23], %26 {strides = array<i32>} : memref<1x1x32xf32, #tpu.memory_space<vmem>>, vector<1x1x32xf32>,
    %c0_24 = arith.constant 0 : index
    %c0_25 = arith.constant 0 : index
    %c0_26 = arith.constant 0 : index
    %28 = vector.load %arg5[%c0_24, %c0_25, %c0_26] : memref<1x1x1xf32, #tpu.memory_space<vmem>>, vector<1x1x1xf32>
    tpu.vector_store %arg5[%c0_24, %c0_25, %c0_26], %10 {strides = array<i32>} : memref<1x1x1xf32, #tpu.memory_space<vmem>>, vector<1x1x1xf32>,
    %c0_i32_27 = arith.constant 0 : i32
    %29 = arith.cmpi eq, %arg1, %c0_i32_27 : i32
    %30 = arith.extui %29 : i1 to i32
    %c0_i32_28 = arith.constant 0 : i32
    %31 = arith.cmpi ne, %30, %c0_i32_28 : i32
    scf.if %31 {
      %c0_29 = arith.constant 0 : index
      %c0_30 = arith.constant 0 : index
      %c0_31 = arith.constant 0 : index
      %32 = vector.load %arg7[%c0_29, %c0_30, %c0_31] : memref<1x1x32xf32, #tpu.memory_space<vmem>>, vector<1x1x32xf32>
      %c0_32 = arith.constant 0 : index
      %c0_33 = arith.constant 0 : index
      %c0_34 = arith.constant 0 : index
      %33 = vector.load %arg6[%c0_32, %c0_33, %c0_34] : memref<1x1x1xf32, #tpu.memory_space<vmem>>, vector<1x1x1xf32>
      %34 = vector.broadcast %33 : vector<1x1x1xf32> to vector<1x1x32xf32>
      %35 = arith.divf %32, %34 : vector<1x1x32xf32>
      %c0_35 = arith.constant 0 : index
      %c0_36 = arith.constant 0 : index
      %c0_37 = arith.constant 0 : index
      %36 = vector.load %arg4[%c0_35, %c0_36, %c0_37] : memref<1x1x32xf32, #tpu.memory_space<vmem>>, vector<1x1x32xf32>
      tpu.vector_store %arg4[%c0_35, %c0_36, %c0_37], %35 {strides = array<i32>} : memref<1x1x32xf32, #tpu.memory_space<vmem>>, vector<1x1x32xf32>,
    } else {
    }
    return
  }
  func.func @transform_0(%arg0: i32, %arg1: i32) -> (i32, i32, i32) {
    %c0_i32 = arith.constant 0 : i32
    %c0_i32_0 = arith.constant 0 : i32
    %c0_i32_1 = arith.constant 0 : i32
    %c0_i32_2 = arith.constant 0 : i32
    return %c0_i32, %c0_i32_0, %c0_i32_1 : i32, i32, i32
  }
  func.func @transform_1(%arg0: i32, %arg1: i32) -> (i32, i32, i32) {
    %c0_i32 = arith.constant 0 : i32
    %c0_i32_0 = arith.constant 0 : i32
    return %arg0, %arg1, %c0_i32 : i32, i32, i32
  }
  func.func @transform_2(%arg0: i32, %arg1: i32) -> (i32, i32, i32) {
    %c0_i32 = arith.constant 0 : i32
    %c0_i32_0 = arith.constant 0 : i32
    %c0_i32_1 = arith.constant 0 : i32
    return %arg0, %c0_i32, %c0_i32_0 : i32, i32, i32
  }
}

</mosaic_0001>

<llo_original>
// kernel: tpu_custom_call.1
$region0: #{tpu_custom_call.1}
  #allocation0 [shape = 'u32[]', space=smem, size = 0x4, offset = 0x4, fixed_abs, tag = 'smem constant byte address 0x4 - core index']
  #allocation1 [shape = 'u32[144,128]{1,0:T(1,128)}', space=vmem, size = 0x12000, scoped, tag = 'internal scratch']
  #allocation2 [shape = 'f32[1,1,1]{2,1,0:T(1,128)}', space=vmem, size = 0x200, scoped, tag = 'scratch operand']
  #allocation3 [shape = 'f32[1,1,1]{2,1,0:T(1,128)}', space=vmem, size = 0x200, scoped, tag = 'scratch operand']
  #allocation4 [shape = 'f32[1,1,32]{2,1,0:T(1,128)}', space=vmem, size = 0x200, scoped, tag = 'scratch operand']
  %s0 = inlined_call_operand.hbm [shape: f32[1,1,32], index: 0, kind: input, shape index: {}]
  %s1 = inlined_call_operand.hbm [shape: f32[2,8,32], index: 1, kind: input, shape index: {}]
  %s2 = inlined_call_operand.hbm [shape: f32[2,1,32], index: 2, kind: output, shape index: {}]
  %s3 = sld [smem:[#allocation0]]
  $region57: #{tpu_custom_call.1} parent=0
    _
  %s5 = ssub.s32 1, %s3
  %s6 = scalar_select 0, %s5, %s3
  $region1: #{tpu_custom_call.1} parent=0
    #allocation5 [shape = 'u8[512]{0}', space=vmem, size = 0x400, scoped, tag = 'input window, operand 0, single buffered']
    #allocation6 [shape = 's32[2]{0}', space=sflag, size = 0x8, scoped, tag = 'scoped memory for tpu_custom_call.1']
    #allocation7 [shape = 's32[2]{0}', space=sflag, size = 0x8, scoped, tag = 'scoped memory for tpu_custom_call.1']
    #allocation8 [shape = 'u8[8192]{0}', space=vmem, size = 0x2000, scoped, tag = 'input window, operand 1']
    #allocation9 [shape = 's32[2]{0}', space=sflag, size = 0x8, scoped, tag = 'scoped memory for tpu_custom_call.1']
    #allocation10 [shape = 'u8[1024]{0}', space=vmem, size = 0x400, scoped, tag = 'output window, operand 0']
    %7 = vsyncpa [#allocation6], 0
    %8 = vsyncpa [#allocation9], 0
    %s9 = scalar_lea.sflag [#allocation9], 1
    %10 = vsyncpa %s9, 0
    %11 = vsyncpa [#allocation7], 0
    %s12 = scalar_lea.sflag [#allocation7], 1
    %13 = vsyncpa %s12, 0
    loop: start=0, step=1, limit=4
    $region2: #{tpu_custom_call.1} parent=1 // loop_pre_header
      _
    $region3: #{tpu_custom_call.1} parent=1 // loop_header
      %s15 = sphi 0, %s19
      %p16 = scmp.ge.s32.totalorder %s15, 4
      %s22 = sphi 0, %s34
      %s23 = sphi 0, %s30
      %s24 = sphi 0, %s22
      %s25 = sphi 0, %s23
      %s26 = sphi 0, %s24
      %s27 = sphi 0, %s25
      %s35 = sphi 0, %s35
      %s37 = sphi 0, %s35
      %s38 = sphi 0, %s37
      %s52 = sphi 0, %s38
      %s60 = sphi 0, %s62
      %s63 = sphi 0, %s60
      %s64 = sphi 0, %s63
      %s80 = sphi 0, %s64
      %s86 = sphi 0, %s88
      %s89 = sphi 0, %s86
      %s90 = sphi 0, %s89
      %s106 = sphi 0, %s90
    $region4: #{tpu_custom_call.1} parent=1 // loop_header_branch
      %18 = sbr.rel (%p16) target = $region8
    $region5: #{tpu_custom_call.1} parent=1 // loop_body
      %s20 = ssub.s32 %s15, 1
      %s21 = ssub.s32 %s15, 2
      %s28 = sadd.s32 1, %s23
      %p29 = scmp.ge.s32.totalorder %s28, 1
      %s30 = scalar_select %p29, 0, %s28
      %s31 = sadd.s32 1, %s22
      %s32 = scalar_select %p29, %s31, %s22
      %p33 = scmp.ge.s32.totalorder %s32, 2
      %s34 = scalar_select %p33, 0, %s32
      %s36 = sadd.s32 %s35, 1
      %p39 = scmp.eq.s32.totalorder %s15, 1
      %p40 = scmp.ne.s32.totalorder %s35, %s37
      %p41 = scmp.eq.s32.totalorder %s15, 0
      %p42 = por %p40, %p41
      %p43 = scmp.ne.s32.totalorder %s35, %s37
      %p44 = scmp.eq.s32.totalorder %s20, 1
      %p45 = por %p43, %p44
      %p46 = scmp.ne.s32.totalorder %s37, %s38
      %p47 = scmp.eq.s32.totalorder %s20, 0
      %p48 = por %p46, %p47
      %p49 = scmp.ne.s32.totalorder %s37, %s38
      %p50 = scmp.eq.s32.totalorder %s21, 1
      %p51 = por %p49, %p50
      %p53 = scmp.ne.s32.totalorder %s38, %s52
      %p54 = scmp.eq.s32.totalorder %s21, 0
      %p55 = por %p53, %p54
      %s56 = ssub.s32 %s22, %s34
      %s57 = ssub.s32 %s23, %s30
      %s58 = sor.u32 %s56, %s57
      %p59 = scmp.eq.s32.totalorder %s58, 0
      %s61 = sadd.s32 %s60, 1
      %s62 = scalar_select %p59, %s60, %s61
      %p65 = pneg %p59
      %p66 = scmp.eq.s32.totalorder %s15, 1
      %p67 = por %p65, %p66
      %p68 = scmp.ne.s32.totalorder %s60, %s63
      %p69 = scmp.eq.s32.totalorder %s15, 0
      %p70 = por %p68, %p69
      %p71 = scmp.ne.s32.totalorder %s60, %s63
      %p72 = scmp.eq.s32.totalorder %s20, 1
      %p73 = por %p71, %p72
      %p74 = scmp.ne.s32.totalorder %s63, %s64
      %p75 = scmp.eq.s32.totalorder %s20, 0
      %p76 = por %p74, %p75
      %p77 = scmp.ne.s32.totalorder %s63, %s64
      %p78 = scmp.eq.s32.totalorder %s21, 1
      %p79 = por %p77, %p78
      %p81 = scmp.ne.s32.totalorder %s64, %s80
      %p82 = scmp.eq.s32.totalorder %s21, 0
      %p83 = por %p81, %p82
      %s84 = ssub.s32 %s22, %s34
      %p85 = scmp.eq.s32.totalorder %s84, 0
      %s87 = sadd.s32 %s86, 1
      %s88 = scalar_select %p85, %s86, %s87
      %p91 = pneg %p85
      %p92 = scmp.eq.s32.totalorder %s15, 1
      %p93 = por %p91, %p92
      %p94 = scmp.ne.s32.totalorder %s86, %s89
      %p95 = scmp.eq.s32.totalorder %s15, 0
      %p96 = por %p94, %p95
      %p97 = scmp.ne.s32.totalorder %s86, %s89
      %p98 = scmp.eq.s32.totalorder %s20, 1
      %p99 = por %p97, %p98
      %p100 = scmp.ne.s32.totalorder %s89, %s90
      %p101 = scmp.eq.s32.totalorder %s20, 0
      %p102 = por %p100, %p101
      %p103 = scmp.ne.s32.totalorder %s89, %s90
      %p104 = scmp.eq.s32.totalorder %s21, 1
      %p105 = por %p103, %p104
      %p107 = scmp.ne.s32.totalorder %s90, %s106
      %p108 = scmp.eq.s32.totalorder %s21, 0
      %p109 = por %p107, %p108
      %p110 = scmp.le.s32.totalorder 1, %s15
      %p111 = scmp.lt.s32.totalorder %s15, 3
      %p112 = pnand %p110, %p111
      %p113 = pneg %p112
      // Predicated region
      $region9: #{tpu_custom_call.1} parent=5 // pred_check
        _
      $region10: #{tpu_custom_call.1} parent=5 // pred_check_branch
        %115 = sbr.rel (%p112) target = $region12
      $region11: #{tpu_custom_call.1} parent=5 // pred_region
        %s116 = ssub.s32 %s15, 1
        // Predicated region
        $region13: #{tpu_custom_call.1} parent=11 // pred_check
          %p117 = pneg %p48
        $region14: #{tpu_custom_call.1} parent=11 // pred_check_branch
          %119 = sbr.rel (%p117) target = $region16
        $region15: #{tpu_custom_call.1} parent=11 // pred_region
          %s121 = ssub.s32 16, 16
          %122 = vsyncadd [#allocation6], %s121
          %s124 = sshll.u32 [#allocation5], 4
          %s125 = int_to_ptr.vmem [resolvable:$true] %s124
          %127 = dma.hbm_to_vmem [thread:$0]  %s0, 16, %s125, [#allocation6]
        $region16: #{tpu_custom_call.1} parent=11 // pred_fallthru
          _
      $region12: #{tpu_custom_call.1} parent=5 // pred_fallthru
        _
      %p128 = scmp.lt.s32.totalorder %s15, 2
      // Predicated region
      $region17: #{tpu_custom_call.1} parent=5 // pred_check
        %p129 = pneg %p128
      $region18: #{tpu_custom_call.1} parent=5 // pred_check_branch
        %131 = sbr.rel (%p129) target = $region20
      $region19: #{tpu_custom_call.1} parent=5 // pred_region
        // Predicated region
        $region21: #{tpu_custom_call.1} parent=19 // pred_check
          %p132 = pneg %p70
        $region22: #{tpu_custom_call.1} parent=19 // pred_check_branch
          %134 = sbr.rel (%p132) target = $region24
        $region23: #{tpu_custom_call.1} parent=19 // pred_region
          %s135 = sand.u32 %s60, 1
          %s136 = scalar_lea.sflag [#allocation9], %s135
          %s137 = sand.u32 %s60, 1
          %s138 = smul.addr %s137, 8
          %s139 = scalar_lea.vmem [#allocation8], %s138
          %s141 = ssub.s32 128, 128
          %142 = vsyncadd %s136, %s141
          %s143 = sadd.s32 %s23, %s22
          %s144 = smul.addr %s143, 128
          %s145 = scalar_lea.hbm %s1, %s144
          %s147 = sshll.u32 %s139, 4
          %s148 = int_to_ptr.vmem [resolvable:$true] %s147
          %150 = dma.hbm_to_vmem [thread:$0]  %s145, 128, %s148, %s136
        $region24: #{tpu_custom_call.1} parent=19 // pred_fallthru
          _
      $region20: #{tpu_custom_call.1} parent=5 // pred_fallthru
        _
      %p151 = scmp.le.s32.totalorder 1, %s15
      %p152 = scmp.lt.s32.totalorder %s15, 3
      %p153 = pnand %p151, %p152
      %p154 = pneg %p153
      // Predicated region
      $region25: #{tpu_custom_call.1} parent=5 // pred_check
        _
      $region26: #{tpu_custom_call.1} parent=5 // pred_check_branch
        %156 = sbr.rel (%p153) target = $region28
      $region27: #{tpu_custom_call.1} parent=5 // pred_region
        %s157 = ssub.s32 %s15, 1
        // Predicated region
        $region29: #{tpu_custom_call.1} parent=27 // pred_check
          %p158 = pneg %p48
        $region30: #{tpu_custom_call.1} parent=27 // pred_check_branch
          %160 = sbr.rel (%p158) target = $region32
        $region31: #{tpu_custom_call.1} parent=27 // pred_region
          %161 = dma.done [#allocation6], 16
        $region32: #{tpu_custom_call.1} parent=27 // pred_fallthru
          _
        %s162 = sand.u32 %s63, 1
        %s163 = scalar_lea.sflag [#allocation9], %s162
        %s164 = sand.u32 %s63, 1
        %s165 = smul.addr %s164, 8
        %s166 = scalar_lea.vmem [#allocation8], %s165
        // Predicated region
        $region33: #{tpu_custom_call.1} parent=27 // pred_check
          %p167 = pneg %p76
        $region34: #{tpu_custom_call.1} parent=27 // pred_check_branch
          %169 = sbr.rel (%p167) target = $region36
        $region35: #{tpu_custom_call.1} parent=27 // pred_region
          %170 = dma.done %s163, 128
        $region36: #{tpu_custom_call.1} parent=27 // pred_fallthru
          _
        %p171 = pneg %p48
        %p172 = pneg %p45
        %s173 = sand.u32 %s63, 1
        %s174 = scalar_lea.sflag [#allocation9], %s173
        %s175 = sand.u32 %s63, 1
        %s176 = smul.addr %s175, 8
        %s177 = scalar_lea.vmem [#allocation8], %s176
        %p178 = pneg %p76
        %p179 = pneg %p73
        %p180 = pneg %p102
        %p181 = pneg %p99
        %s182 = sand.u32 %s89, 1
        %s183 = scalar_lea.sflag [#allocation7], %s182
        %s184 = sand.u32 %s89, 1
        %s185 = scalar_lea.vmem [#allocation10], %s184
        %p186 = scmp.eq.s32.totalorder %s25, 0
        // Predicated region
        $region37: #{tpu_custom_call.1} parent=27 // pred_check
          %p187 = pneg %p186
        $region38: #{tpu_custom_call.1} parent=27 // pred_check_branch
          %189 = sbr.rel (%p187) target = $region40
        $region39: #{tpu_custom_call.1} parent=27 // pred_region
          %vm190 = vcmask 0
          %191 = vst.msk [vmem:[#allocation2] sm:$0x1] %vm190, -inf
          %192 = vst.msk [vmem:[#allocation3] sm:$0x1] %vm190, 0.0
          %vm193 = vcmask 253952
          %194 = vst.msk [vmem:[#allocation4] sm:$0x1] %vm193, 0.0
        $region40: #{tpu_custom_call.1} parent=27 // pred_fallthru
          _
        %v195 = vld [vmem:[%s166] sm:$0xff]
        %v196 = vld [vmem:[#allocation5] sm:$0x1]
        %vm197 = vcmask 261120
        %v199 = vsel %vm197, %v196, 0
        %v202 = vsel %vm197, %v195, 0
        %204 = vmatprep.subr.mxu0 0.0
        %205 = vmatpush1.xpose.msra.mxu0 0.0
        %206 = vmatprep.subr.mxu0 0.0
        %207 = vmatpush1.xpose.msra.mxu0 0.0
        %208 = vmatprep.subr.mxu0 0.0
        %209 = vmatpush1.xpose.msra.mxu0 0.0
        %210 = vmatprep.subr.mxu0 0.0
        %211 = vmatpush1.xpose.msra.mxu0 0.0
        %212 = vmatprep.subr.mxu0 0.0
        %213 = vmatpush1.xpose.msra.mxu0 0.0
        %214 = vmatprep.subr.mxu0 0.0
        %215 = vmatpush1.xpose.msra.mxu0 0.0
        %216 = vmatprep.subr.mxu0 0.0
        %217 = vmatpush1.xpose.msra.mxu0 0.0
        %218 = vmatprep.subr.mxu0 0.0
        %219 = vmatpush1.xpose.msra.mxu0 0.0
        %220 = vmatprep.subr.mxu0 0.0
        %221 = vmatpush1.xpose.msra.mxu0 0.0
        %222 = vmatprep.subr.mxu0 0.0
        %223 = vmatpush1.xpose.msra.mxu0 0.0
        %224 = vmatprep.subr.mxu0 0.0
        %225 = vmatpush1.xpose.msra.mxu0 0.0
        %226 = vmatprep.subr.mxu0 0.0
        %227 = vmatpush1.xpose.msra.mxu0 0.0
        %228 = vmatprep.subr.mxu0 0.0
        %229 = vmatpush1.xpose.msra.mxu0 0.0
        %230 = vmatprep.subr.mxu0 0.0
        %231 = vmatpush1.xpose.msra.mxu0 0.0
        %232 = vmatprep.subr.mxu0 0.0
        %233 = vmatpush1.xpose.msra.mxu0 0.0
        %234 = vmatprep.subr.mxu0 0.0
        %235 = vmatpush1.xpose.msra.mxu0 %v202
        %236 = vmatprep.subr.mxu0 0.0
        %237 = vmatpush2.xpose.msra.mxu0 0.0
        %238 = vmatprep.subr.mxu0 0.0
        %239 = vmatpush2.xpose.msra.mxu0 0.0
        %240 = vmatprep.subr.mxu0 0.0
        %241 = vmatpush2.xpose.msra.mxu0 0.0
        %242 = vmatprep.subr.mxu0 0.0
        %243 = vmatpush2.xpose.msra.mxu0 0.0
        %244 = vmatprep.subr.mxu0 0.0
        %245 = vmatpush2.xpose.msra.mxu0 0.0
        %246 = vmatprep.subr.mxu0 0.0
        %247 = vmatpush2.xpose.msra.mxu0 0.0
        %248 = vmatprep.subr.mxu0 0.0
        %249 = vmatpush2.xpose.msra.mxu0 0.0
        %250 = vmatprep.subr.mxu0 0.0
        %251 = vmatpush2.xpose.msra.mxu0 0.0
        %252 = vmatprep.subr.mxu0 0.0
        %253 = vmatpush2.xpose.msra.mxu0 0.0
        %254 = vmatprep.subr.mxu0 0.0
        %255 = vmatpush2.xpose.msra.mxu0 0.0
        %256 = vmatprep.subr.mxu0 0.0
        %257 = vmatpush2.xpose.msra.mxu0 0.0
        %258 = vmatprep.subr.mxu0 0.0
        %259 = vmatpush2.xpose.msra.mxu0 0.0
        %260 = vmatprep.subr.mxu0 0.0
        %261 = vmatpush2.xpose.msra.mxu0 0.0
        %262 = vmatprep.subr.mxu0 0.0
        %263 = vmatpush2.xpose.msra.mxu0 0.0
        %264 = vmatprep.subr.mxu0 0.0
        %265 = vmatpush2.xpose.msra.mxu0 0.0
        %266 = vmatprep.subr.mxu0 0.0
        %267 = vmatpush2.xpose.msra.mxu0 0.0
        %268 = vmatprep.mubr.f32.mxu0 0.0
        %269 = vmatmul.mubr.f32.gmra.mxu0 %v199
        %v270 = vpop.f32.mrf.mxu0
        %v271 = vadd.f32 0.0, %v270
        %v272 = vpop.f32.mrf.mxu0
        %273 = vdwg.mxu0
        %v274 = vtanh.pop %v271
        %v275 = vld [vmem:[#allocation2] sm:$0x1]
        %vm276 = vcmask 57344
        %v277 = vsel %vm276, %v274, -inf
        %278 = vmax.xlane.f32.xlu0 %v277
        %v279 = vpop.xlane.xlu0 %278
        %v280 = vmax.f32 %v275, %v279
        %v281 = vsub.f32 %v275, %v280
        %v282 = vmul.f32 %v281, 1.442695
        %v283 = vpow.pop %v282
        %285 = vset.pattern.permute.xlu0 0
        %286 = vperm.xlu0 %285, %v280
        %v287 = vpop.permute.xlu0 %286
        %v289 = vlaneseq
        %v290 = vshrl.u32 %v289, 7
        %v291 = vsub.s32 0, %v290
        %v292 = vrot.slane %v287, %v291
        %v293 = vsub.f32 %v274, %v292
        %v294 = vmul.f32 %v293, 1.442695
        %v295 = vpow.pop %v294
        %v296 = vld [vmem:[#allocation3] sm:$0x1]
        %v297 = vmul.f32 %v283, %v296
        %v298 = vsel %vm276, %v295, 0.0
        %299 = vadd.xlane.f32.xlu0 %v298
        %v300 = vpop.xlane.xlu0 %299
        %v301 = vadd.f32 %v297, %v300
        %vm302 = vcmask 0
        %303 = vst.msk [vmem:[#allocation3] sm:$0x1] %vm302, %v301
        %v304 = vld [vmem:[#allocation4] sm:$0x1]
        %306 = vset.pattern.permute.xlu0 0
        %307 = vperm.xlu0 %306, %v283
        %v308 = vpop.permute.xlu0 %307
        %v310 = vlaneseq
        %v311 = vshrl.u32 %v310, 7
        %v312 = vsub.s32 0, %v311
        %v313 = vrot.slane %v308, %v312
        %v314 = vmul.f32 %v313, %v304
        %vm315 = vcmask 64512
        %v317 = vsel %vm315, %v295, 0
        %319 = vmatprep.subr.mxu0 0.0
        %320 = vmatpush1.msra.mxu0 0.0
        %321 = vmatprep.subr.mxu0 0.0
        %322 = vmatpush1.msra.mxu0 0.0
        %323 = vmatprep.subr.mxu0 0.0
        %324 = vmatpush1.msra.mxu0 0.0
        %325 = vmatprep.subr.mxu0 0.0
        %326 = vmatpush1.msra.mxu0 0.0
        %327 = vmatprep.subr.mxu0 0.0
        %328 = vmatpush1.msra.mxu0 0.0
        %329 = vmatprep.subr.mxu0 0.0
        %330 = vmatpush1.msra.mxu0 0.0
        %331 = vmatprep.subr.mxu0 0.0
        %332 = vmatpush1.msra.mxu0 0.0
        %333 = vmatprep.subr.mxu0 0.0
        %334 = vmatpush1.msra.mxu0 0.0
        %335 = vmatprep.subr.mxu0 0.0
        %336 = vmatpush1.msra.mxu0 0.0
        %337 = vmatprep.subr.mxu0 0.0
        %338 = vmatpush1.msra.mxu0 0.0
        %339 = vmatprep.subr.mxu0 0.0
        %340 = vmatpush1.msra.mxu0 0.0
        %341 = vmatprep.subr.mxu0 0.0
        %342 = vmatpush1.msra.mxu0 0.0
        %343 = vmatprep.subr.mxu0 0.0
        %344 = vmatpush1.msra.mxu0 0.0
        %345 = vmatprep.subr.mxu0 0.0
        %346 = vmatpush1.msra.mxu0 0.0
        %347 = vmatprep.subr.mxu0 0.0
        %348 = vmatpush1.msra.mxu0 0.0
        %349 = vmatprep.subr.mxu0 0.0
        %350 = vmatpush1.msra.mxu0 %v195
        %351 = vmatprep.subr.mxu0 0.0
        %352 = vmatpush2.msra.mxu0 0.0
        %353 = vmatprep.subr.mxu0 0.0
        %354 = vmatpush2.msra.mxu0 0.0
        %355 = vmatprep.subr.mxu0 0.0
        %356 = vmatpush2.msra.mxu0 0.0
        %357 = vmatprep.subr.mxu0 0.0
        %358 = vmatpush2.msra.mxu0 0.0
        %359 = vmatprep.subr.mxu0 0.0
        %360 = vmatpush2.msra.mxu0 0.0
        %361 = vmatprep.subr.mxu0 0.0
        %362 = vmatpush2.msra.mxu0 0.0
        %363 = vmatprep.subr.mxu0 0.0
        %364 = vmatpush2.msra.mxu0 0.0
        %365 = vmatprep.subr.mxu0 0.0
        %366 = vmatpush2.msra.mxu0 0.0
        %367 = vmatprep.subr.mxu0 0.0
        %368 = vmatpush2.msra.mxu0 0.0
        %369 = vmatprep.subr.mxu0 0.0
        %370 = vmatpush2.msra.mxu0 0.0
        %371 = vmatprep.subr.mxu0 0.0
        %372 = vmatpush2.msra.mxu0 0.0
        %373 = vmatprep.subr.mxu0 0.0
        %374 = vmatpush2.msra.mxu0 0.0
        %375 = vmatprep.subr.mxu0 0.0
        %376 = vmatpush2.msra.mxu0 0.0
        %377 = vmatprep.subr.mxu0 0.0
        %378 = vmatpush2.msra.mxu0 0.0
        %379 = vmatprep.subr.mxu0 0.0
        %380 = vmatpush2.msra.mxu0 0.0
        %381 = vmatprep.subr.mxu0 0.0
        %382 = vmatpush2.msra.mxu0 0.0
        %383 = vmatprep.mubr.f32.mxu0 0.0
        %384 = vmatmul.mubr.f32.gmra.mxu0 %v317
        %v385 = vpop.f32.mrf.mxu0
        %v386 = vadd.f32 0.0, %v385
        %v387 = vpop.f32.mrf.mxu0
        %388 = vdwg.mxu0
        %v389 = vadd.f32 %v314, %v386
        %vm390 = vcmask 253952
        %391 = vst.msk [vmem:[#allocation4] sm:$0x1] %vm390, %v389
        %392 = vst.msk [vmem:[#allocation2] sm:$0x1] %vm302, %v280
        // Predicated region
        $region41: #{tpu_custom_call.1} parent=27 // pred_check
          %p393 = pneg %p186
        $region42: #{tpu_custom_call.1} parent=27 // pred_check_branch
          %395 = sbr.rel (%p393) target = $region44
        $region43: #{tpu_custom_call.1} parent=27 // pred_region
          %v396 = vld [vmem:[#allocation4] sm:$0x1]
          %v397 = vld [vmem:[#allocation3] sm:$0x1]
          %399 = vset.pattern.permute.xlu0 0
          %400 = vperm.xlu0 %399, %v397
          %v401 = vpop.permute.xlu0 %400
          %v403 = vlaneseq
          %v404 = vshrl.u32 %v403, 7
          %v405 = vsub.s32 0, %v404
          %v406 = vrot.slane %v401, %v405
          %v407 = vrcp.pop %v406
          %v408 = vmul.f32 %v396, %v407
          %409 = vst.msk [vmem:[%s185] sm:$0x1] %vm390, %v408
        $region44: #{tpu_custom_call.1} parent=27 // pred_fallthru
          _
        %s410 = sand.u32 %s89, 1
        %s411 = scalar_lea.sflag [#allocation7], %s410
        %s412 = sand.u32 %s89, 1
        %s413 = scalar_lea.vmem [#allocation10], %s412
        // Predicated region
        $region45: #{tpu_custom_call.1} parent=27 // pred_check
          %p414 = pneg %p99
        $region46: #{tpu_custom_call.1} parent=27 // pred_check_branch
          %416 = sbr.rel (%p414) target = $region48
        $region47: #{tpu_custom_call.1} parent=27 // pred_region
          %s418 = ssub.s32 16, 16
          %419 = vsyncadd %s411, %s418
          %s420 = smul.addr %s24, 16
          %s421 = scalar_lea.hbm %s2, %s420
          %s423 = sshll.u32 %s413, 4
          %s424 = int_to_ptr.vmem [resolvable:$true] %s423
          %426 = dma.vmem_to_hbm [thread:$0]  %s424, 16, %s421, %s411
        $region48: #{tpu_custom_call.1} parent=27 // pred_fallthru
          _
      $region28: #{tpu_custom_call.1} parent=5 // pred_fallthru
        _
      %p427 = scmp.le.s32.totalorder 2, %s15
      // Predicated region
      $region49: #{tpu_custom_call.1} parent=5 // pred_check
        %p428 = pneg %p427
      $region50: #{tpu_custom_call.1} parent=5 // pred_check_branch
        %430 = sbr.rel (%p428) target = $region52
      $region51: #{tpu_custom_call.1} parent=5 // pred_region
        %s431 = ssub.s32 %s15, 2
        // Predicated region
        $region53: #{tpu_custom_call.1} parent=51 // pred_check
          %p432 = pneg %p105
        $region54: #{tpu_custom_call.1} parent=51 // pred_check_branch
          %434 = sbr.rel (%p432) target = $region56
        $region55: #{tpu_custom_call.1} parent=51 // pred_region
          %s435 = sand.u32 %s90, 1
          %s436 = scalar_lea.sflag [#allocation7], %s435
          %s437 = sand.u32 %s90, 1
          %s438 = scalar_lea.vmem [#allocation10], %s437
          %439 = dma.done %s436, 16
        $region56: #{tpu_custom_call.1} parent=51 // pred_fallthru
          _
      $region52: #{tpu_custom_call.1} parent=5 // pred_fallthru
        _
    $region6: #{tpu_custom_call.1} parent=1 // loop_footer
      %s19 = sadd.s32 1, %s15
    $region7: #{tpu_custom_call.1} parent=1 // loop_footer_branch
      %14 = sbr.rel target = $region3
    $region8: #{tpu_custom_call.1} parent=1 // loop_exit
      _
    %440 = vsyncpa [#allocation6], 1
    %s441 = scalar_lea.sflag [#allocation6], 1
    %442 = vsyncpa %s441, 1
    %443 = vsyncpa [#allocation9], 1
    %s444 = scalar_lea.sflag [#allocation9], 1
    %445 = vsyncpa %s444, 1
    %446 = vsyncpa [#allocation7], 1
    %s447 = scalar_lea.sflag [#allocation7], 1
    %448 = vsyncpa %s447, 1

</llo_original>
